<compile_context>
chip_gen: v7x
topology: tpu7x:2x2x1
jax: 0.10.0
libtpu: 0.0.40
codegen_flags: <defaults>
</compile_context>

<pallas_src>
import functools

import jax
import jax.numpy as jnp
from jax.experimental import pallas as pl
from jax.experimental.pallas import tpu as pltpu

LOG_SIG_MAX = 2.0
LOG_SIG_MIN = -5.0
MEAN_MAX = 9.0
MEAN_MIN = -9.0


def _round_up(x, m):
    return ((x + m - 1) // m) * m


def _cdiv(a, b):
    return -(-a // b)


def densenet_actor_kernel(action_dim,
                          x_ref,
                          wx_ref, b1_ref,
                          wh1_ref, b2_ref,
                          wh2_ref, bh_ref,
                          out_ref):
    # Padded hidden width (multiple of 128) is recovered from the bias shape.
    hp = b1_ref.shape[-1]
    x = x_ref[...]

    # One matmul against x for all three consumers of the raw input:
    # columns [0, hp)       -> layer-1 pre-activation
    # columns [hp, 2hp)     -> layer-2 "x" partial
    # columns [2hp, 2hp+P)  -> head "x" partial
    xw = jnp.dot(x, wx_ref[...], preferred_element_type=jnp.float32)

    h1 = xw[:, :hp] + b1_ref[...]
    h1 = h1 * jax.nn.sigmoid(h1)          # SiLU; padded cols stay exactly 0.

    # One matmul against h1 for layer-2 and the head.
    h1w = jnp.dot(h1, wh1_ref[...], preferred_element_type=jnp.float32)

    h2 = xw[:, hp:2 * hp] + h1w[:, :hp] + b2_ref[...]
    h2 = h2 * jax.nn.sigmoid(h2)

    # Fused heads (lane-padded to 128): cols [0, A) mean, [A, 2A) log_std,
    # [2A, 128) zero padding (sliced off in the wrapper).
    heads = (xw[:, 2 * hp:]
             + h1w[:, hp:]
             + jnp.dot(h2, wh2_ref[...], preferred_element_type=jnp.float32)
             + bh_ref[...])

    col = jax.lax.broadcasted_iota(jnp.int32, heads.shape, 1)
    is_mean = col < action_dim
    lo = jnp.where(is_mean, MEAN_MIN, LOG_SIG_MIN)
    hi = jnp.where(is_mean, MEAN_MAX, LOG_SIG_MAX)
    clipped = jnp.clip(heads, lo, hi)
    # mean columns: clamped value; log_std columns (and padding): exp(clamped).
    out_ref[...] = jnp.where(is_mean, clipped, jnp.exp(clipped)).astype(out_ref.dtype)


def _choose_tile(batch, input_dim, hp, out_pad):
    """Batch tile from a VMEM budget; minimal pad waste."""
    # Rough live floats per batch row inside one grid step:
    #   double-buffered x block, double-buffered out block, xw, h1, h1w, h2,
    #   heads temporaries.
    floats_per_row = 2 * input_dim + 5 * hp + 6 * out_pad
    bytes_per_row = 4 * floats_per_row
    budget = 8 * 1024 * 1024          # compute-intermediate budget per step
    max_tb = budget // max(bytes_per_row, 1)
    max_tb = max(8, min(4096, (max_tb // 8) * 8))

    n_steps = _cdiv(batch, max_tb)
    tb = _round_up(_cdiv(batch, n_steps), 8)
    return tb, n_steps


@functools.partial(jax.jit, static_argnames=("action_dim",))
def densenet_actor_forward(state, packed_params, action_dim):
    """Runs the fused DenseNetActor forward. Returns (mean, std)."""
    wx, b1, wh1, b2, wh2, bh = packed_params
    batch, input_dim = state.shape
    hp = b1.shape[1]              # hidden dim padded to 128
    out_pad = bh.shape[1]         # head width padded to 128

    tb, n_steps = _choose_tile(batch, input_dim, hp, out_pad)
    padded = n_steps * tb
    if padded != batch:
        state = jnp.pad(state, ((0, padded - batch), (0, 0)))

    kernel = functools.partial(densenet_actor_kernel, action_dim)

    x_spec = pl.BlockSpec((tb, input_dim), lambda i: (i, 0))
    out_spec = pl.BlockSpec((tb, out_pad), lambda i: (i, 0))

    def resident(arr):
        # Weights / biases: DMA'd once, VMEM-resident across all grid steps.
        return pl.BlockSpec(arr.shape, lambda i: (0, 0))

    compiler_params = pltpu.CompilerParams(
        dimension_semantics=("parallel",),
        # Real footprint is a few MiB; 16 MiB leaves headroom everywhere
        # (fits v5e's default scoped budget and crowds nothing on v7x).
        vmem_limit_bytes=16 * 1024 * 1024,
    )

    out = pl.pallas_call(
        kernel,
        out_shape=jax.ShapeDtypeStruct((padded, out_pad), jnp.float32),
        grid=(n_steps,),
        in_specs=[x_spec,
                  resident(wx), resident(b1),
                  resident(wh1), resident(b2),
                  resident(wh2), resident(bh)],
        out_specs=out_spec,
        compiler_params=compiler_params,
    )(state, wx, b1, wh1, b2, wh2, bh)

    mean = out[:batch, :action_dim]
    std = out[:batch, action_dim:2 * action_dim]
    return mean, std


def init_params(key, input_dim, hidden_dim, action_dim, num_layers=2,
                init_w=0.001):
    """Synthetic init mirroring DenseNetActor parameter shapes.

    Weights are stored as (in_features, out_features) (transposed vs PyTorch);
    biases as (1, out_features) rows.
    """
    assert num_layers == 2, "this script instantiates the default num_layers=2"
    # TODO(synk): generalize the kernel to arbitrary num_layers (the module
    # default is 2, which is what is fused here).
    keys = jax.random.split(key, 8)
    fc_in = input_dim

    w1 = jax.random.normal(keys[0], (fc_in, hidden_dim), jnp.float32) * 0.05
    b1 = jax.random.normal(keys[1], (1, hidden_dim), jnp.float32) * 0.05
    fc_in += hidden_dim

    w2 = jax.random.normal(keys[2], (fc_in, hidden_dim), jnp.float32) * 0.05
    b2 = jax.random.normal(keys[3], (1, hidden_dim), jnp.float32) * 0.05
    fc_in += hidden_dim

    wm = jax.random.uniform(keys[4], (fc_in, action_dim), jnp.float32,
                            -init_w, init_w)
    bm = jax.random.uniform(keys[5], (1, action_dim), jnp.float32,
                            -init_w, init_w)
    ws = jax.random.uniform(keys[6], (fc_in, action_dim), jnp.float32,
                            -init_w, init_w)
    bs = jax.random.uniform(keys[7], (1, action_dim), jnp.float32,
                            -init_w, init_w)
    return (w1, b1, w2, b2, wm, bm, ws, bs)


def pack_params(params, input_dim, hidden_dim, action_dim):
    """One-time reshaping for the kernel.

    Splits the DenseNet concat dims, fuses the mean/log_std heads, zero-pads
    every fused segment to a 128-lane boundary (so in-kernel slices are
    lane-aligned and the head store is unmasked), and concatenates weights
    that share the same LHS along the output axis (3 matmuls instead of 6).
    """
    w1, b1, w2, b2, wm, bm, ws, bs = params
    hp = _round_up(hidden_dim, 128)
    out_pad = _round_up(2 * action_dim, 128)

    def pad_cols(a, width):
        return jnp.pad(a, ((0, 0), (0, width - a.shape[1])))

    def pad_rows(a, rows):
        return jnp.pad(a, ((0, rows - a.shape[0]), (0, 0)))

    # Split layer-2 weight along its (input_dim + hidden) input axis.
    w2x = w2[:input_dim]
    w2h = w2[input_dim:]
    # Fuse mean / log_std heads along the output axis, then split the
    # (input_dim + 2*hidden) input axis to match [x, h1, h2].
    wh = jnp.concatenate([wm, ws], axis=1)
    whx = wh[:input_dim]
    wh1 = wh[input_dim:input_dim + hidden_dim]
    wh2 = wh[input_dim + hidden_dim:]
    bh = jnp.concatenate([bm, bs], axis=1)

    # Lane-pad every segment; row-pad anything multiplied by padded h1/h2.
    w1_p = pad_cols(w1, hp)
    b1_p = pad_cols(b1, hp)
    w2x_p = pad_cols(w2x, hp)
    w2h_p = pad_cols(pad_rows(w2h, hp), hp)
    b2_p = pad_cols(b2, hp)
    whx_p = pad_cols(whx, out_pad)
    wh1_p = pad_cols(pad_rows(wh1, hp), out_pad)
    wh2_p = pad_cols(pad_rows(wh2, hp), out_pad)
    bh_p = pad_cols(bh, out_pad)

    wx_fused = jnp.concatenate([w1_p, w2x_p, whx_p], axis=1)   # (in, 2hp+P)
    wh1_fused = jnp.concatenate([w2h_p, wh1_p], axis=1)        # (hp, hp+P)
    return (wx_fused, b1_p, wh1_fused, b2_p, wh2_p, bh_p)


def reference_forward(state, params):
    """Pure-JAX reference of DenseNetActor.forward (original concat form)."""
    w1, b1, w2, b2, wm, bm, ws, bs = params

    def silu(v):
        return v * jax.nn.sigmoid(v)

    x = state
    h1 = silu(x @ w1 + b1)
    x = jnp.concatenate([x, h1], axis=-1)
    h2 = silu(x @ w2 + b2)
    x = jnp.concatenate([x, h2], axis=-1)
    mean = jnp.clip(x @ wm + bm, MEAN_MIN, MEAN_MAX)
    log_std = jnp.clip(x @ ws + bs, LOG_SIG_MIN, LOG_SIG_MAX)
    return mean, jnp.exp(log_std)


if __name__ == "__main__":
    key = jax.random.PRNGKey(0)
    k_params, k_state, k_state2 = jax.random.split(key, 3)

    batch = 2
    input_dim = 12
    hidden_dim = 32
    action_dim = 6
    num_layers = 2

    params = init_params(k_params, input_dim, hidden_dim, action_dim,
                         num_layers=num_layers, init_w=0.001)
    packed = pack_params(params, input_dim, hidden_dim, action_dim)

    # Small deterministic check.
    state = jax.random.normal(k_state, (batch, input_dim), jnp.float32)
    mean, std = densenet_actor_forward(state, packed, action_dim)
    jax.block_until_ready((mean, std))
    ref_mean, ref_std = reference_forward(state, params)
    assert mean.shape == (batch, action_dim) and std.shape == (batch, action_dim)
    assert jnp.allclose(mean, ref_mean, atol=1e-5, rtol=1e-4)
    assert jnp.allclose(std, ref_std, atol=1e-5, rtol=1e-4)

    # Second check exercising the batch-padding path (non multiple of 8).
    batch2 = 37
    state2 = jax.random.normal(k_state2, (batch2, input_dim), jnp.float32)
    mean2, std2 = densenet_actor_forward(state2, packed, action_dim)
    jax.block_until_ready((mean2, std2))
    ref_mean2, ref_std2 = reference_forward(state2, params)
    assert mean2.shape == (batch2, action_dim) and std2.shape == (batch2, action_dim)
    assert jnp.allclose(mean2, ref_mean2, atol=1e-5, rtol=1e-4)
    assert jnp.allclose(std2, ref_std2, atol=1e-5, rtol=1e-4)

    print("KERNEL_OK")
</pallas_src>

<mosaic_0001>
module attributes {stable_mosaic.version = 11 : i64} {
  func.func @densenet_actor_kernel(%arg0: i32, %arg1: memref<8x12xf32, #tpu.memory_space<vmem>>, %arg2: memref<12x384xf32, #tpu.memory_space<vmem>>, %arg3: memref<1x128xf32, #tpu.memory_space<vmem>>, %arg4: memref<128x256xf32, #tpu.memory_space<vmem>>, %arg5: memref<1x128xf32, #tpu.memory_space<vmem>>, %arg6: memref<128x128xf32, #tpu.memory_space<vmem>>, %arg7: memref<1x128xf32, #tpu.memory_space<vmem>>, %arg8: memref<8x128xf32, #tpu.memory_space<vmem>>) attributes {dimension_semantics = [#tpu.dimension_semantics<parallel>], iteration_bounds = array<i64: 1>, scalar_prefetch = 0 : i64, scratch_operands = 0 : i64, tpu.core_type = #tpu.core_type<tc>, window_params = [{transform_indices = @transform_0, window_bounds = array<i64: 8, 12>}, {pipeline_mode = #tpu.pipeline_mode<synchronous>, transform_indices = @transform_1, window_bounds = array<i64: 12, 384>}, {pipeline_mode = #tpu.pipeline_mode<synchronous>, transform_indices = @transform_2, window_bounds = array<i64: 1, 128>}, {pipeline_mode = #tpu.pipeline_mode<synchronous>, transform_indices = @transform_3, window_bounds = array<i64: 128, 256>}, {pipeline_mode = #tpu.pipeline_mode<synchronous>, transform_indices = @transform_4, window_bounds = array<i64: 1, 128>}, {pipeline_mode = #tpu.pipeline_mode<synchronous>, transform_indices = @transform_5, window_bounds = array<i64: 128, 128>}, {pipeline_mode = #tpu.pipeline_mode<synchronous>, transform_indices = @transform_6, window_bounds = array<i64: 1, 128>}, {transform_indices = @transform_7, window_bounds = array<i64: 8, 128>}]} {
    %c0 = arith.constant 0 : index
    %c0_0 = arith.constant 0 : index
    %0 = vector.load %arg1[%c0, %c0_0] : memref<8x12xf32, #tpu.memory_space<vmem>>, vector<8x12xf32>
    %c0_1 = arith.constant 0 : index
    %c0_2 = arith.constant 0 : index
    %1 = vector.load %arg2[%c0_1, %c0_2] : memref<12x384xf32, #tpu.memory_space<vmem>>, vector<12x384xf32>
    %cst = arith.constant dense<0.000000e+00> : vector<8x384xf32>
    %2 = tpu.matmul %0, %1, %cst {dimension_numbers = #tpu.dot_dimension_numbers<[1], [0], [0], [1], [0, 0, 1, 1], [], []>} : vector<8x12xf32>, vector<12x384xf32>, vector<8x384xf32> -> vector<8x384xf32>
    %3 = vector.extract_strided_slice %2 {offsets = [0, 0], sizes = [8, 128], strides = [1, 1]} : vector<8x384xf32> to vector<8x128xf32>
    %c0_3 = arith.constant 0 : index
    %c0_4 = arith.constant 0 : index
    %4 = vector.load %arg3[%c0_3, %c0_4] : memref<1x128xf32, #tpu.memory_space<vmem>>, vector<1x128xf32>
    %5 = vector.broadcast %4 : vector<1x128xf32> to vector<8x128xf32>
    %6 = arith.addf %3, %5 : vector<8x128xf32>
    %7 = arith.negf %6 : vector<8x128xf32>
    %8 = math.exp %7 : vector<8x128xf32>
    %cst_5 = arith.constant 1.000000e+00 : f32
    %9 = vector.broadcast %cst_5 : f32 to vector<8x128xf32>
    %10 = arith.addf %9, %8 : vector<8x128xf32>
    %11 = arith.divf %9, %10 : vector<8x128xf32>
    %12 = arith.mulf %6, %11 : vector<8x128xf32>
    %c0_6 = arith.constant 0 : index
    %c0_7 = arith.constant 0 : index
    %13 = vector.load %arg4[%c0_6, %c0_7] : memref<128x256xf32, #tpu.memory_space<vmem>>, vector<128x256xf32>
    %cst_8 = arith.constant dense<0.000000e+00> : vector<8x256xf32>
    %14 = tpu.matmul %12, %13, %cst_8 {dimension_numbers = #tpu.dot_dimension_numbers<[1], [0], [0], [1], [0, 0, 1, 1], [], []>} : vector<8x128xf32>, vector<128x256xf32>, vector<8x256xf32> -> vector<8x256xf32>
    %15 = vector.extract_strided_slice %2 {offsets = [0, 128], sizes = [8, 128], strides = [1, 1]} : vector<8x384xf32> to vector<8x128xf32>
    %16 = vector.extract_strided_slice %14 {offsets = [0, 0], sizes = [8, 128], strides = [1, 1]} : vector<8x256xf32> to vector<8x128xf32>
    %17 = arith.addf %15, %16 : vector<8x128xf32>
    %c0_9 = arith.constant 0 : index
    %c0_10 = arith.constant 0 : index
    %18 = vector.load %arg5[%c0_9, %c0_10] : memref<1x128xf32, #tpu.memory_space<vmem>>, vector<1x128xf32>
    %19 = vector.broadcast %18 : vector<1x128xf32> to vector<8x128xf32>
    %20 = arith.addf %17, %19 : vector<8x128xf32>
    %21 = arith.negf %20 : vector<8x128xf32>
    %22 = math.exp %21 : vector<8x128xf32>
    %cst_11 = arith.constant 1.000000e+00 : f32
    %23 = vector.broadcast %cst_11 : f32 to vector<8x128xf32>
    %24 = arith.addf %23, %22 : vector<8x128xf32>
    %25 = arith.divf %23, %24 : vector<8x128xf32>
    %26 = arith.mulf %20, %25 : vector<8x128xf32>
    %27 = vector.extract_strided_slice %2 {offsets = [0, 256], sizes = [8, 128], strides = [1, 1]} : vector<8x384xf32> to vector<8x128xf32>
    %28 = vector.extract_strided_slice %14 {offsets = [0, 128], sizes = [8, 128], strides = [1, 1]} : vector<8x256xf32> to vector<8x128xf32>
    %29 = arith.addf %27, %28 : vector<8x128xf32>
    %c0_12 = arith.constant 0 : index
    %c0_13 = arith.constant 0 : index
    %30 = vector.load %arg6[%c0_12, %c0_13] : memref<128x128xf32, #tpu.memory_space<vmem>>, vector<128x128xf32>
    %cst_14 = arith.constant dense<0.000000e+00> : vector<8x128xf32>
    %31 = tpu.matmul %26, %30, %cst_14 {dimension_numbers = #tpu.dot_dimension_numbers<[1], [0], [0], [1], [0, 0, 1, 1], [], []>} : vector<8x128xf32>, vector<128x128xf32>, vector<8x128xf32> -> vector<8x128xf32>
    %32 = arith.addf %29, %31 : vector<8x128xf32>
    %c0_15 = arith.constant 0 : index
    %c0_16 = arith.constant 0 : index
    %33 = vector.load %arg7[%c0_15, %c0_16] : memref<1x128xf32, #tpu.memory_space<vmem>>, vector<1x128xf32>
    %34 = vector.broadcast %33 : vector<1x128xf32> to vector<8x128xf32>
    %35 = arith.addf %32, %34 : vector<8x128xf32>
    %36 = tpu.iota {dimensions = array<i32: 1>} : vector<8x128xi32>
    %c6_i32 = arith.constant 6 : i32
    %37 = vector.broadcast %c6_i32 : i32 to vector<8x128xi32>
    %38 = arith.cmpi slt, %36, %37 : vector<8x128xi32>
    %cst_17 = arith.constant -9.000000e+00 : f32
    %cst_18 = arith.constant -5.000000e+00 : f32
    %39 = vector.broadcast %cst_17 : f32 to vector<8x128xf32>
    %40 = vector.broadcast %cst_18 : f32 to vector<8x128xf32>
    %41 = arith.select %38, %39, %40 : vector<8x128xi1>, vector<8x128xf32>
    %cst_19 = arith.constant 9.000000e+00 : f32
    %cst_20 = arith.constant 2.000000e+00 : f32
    %42 = vector.broadcast %cst_19 : f32 to vector<8x128xf32>
    %43 = vector.broadcast %cst_20 : f32 to vector<8x128xf32>
    %44 = arith.select %38, %42, %43 : vector<8x128xi1>, vector<8x128xf32>
    %45 = arith.maximumf %41, %35 : vector<8x128xf32>
    %46 = arith.minimumf %44, %45 : vector<8x128xf32>
    %47 = math.exp %46 : vector<8x128xf32>
    %48 = arith.select %38, %46, %47 : vector<8x128xi1>, vector<8x128xf32>
    %c0_21 = arith.constant 0 : index
    %c0_22 = arith.constant 0 : index
    %49 = vector.load %arg8[%c0_21, %c0_22] : memref<8x128xf32, #tpu.memory_space<vmem>>, vector<8x128xf32>
    tpu.vector_store %arg8[%c0_21, %c0_22], %48 {strides = array<i32>} : memref<8x128xf32, #tpu.memory_space<vmem>>, vector<8x128xf32>,
    return
  }
  func.func @transform_0(%arg0: i32) -> (i32, i32) {
    %c0_i32 = arith.constant 0 : i32
    %c0_i32_0 = arith.constant 0 : i32
    return %arg0, %c0_i32 : i32, i32
  }
  func.func @transform_1(%arg0: i32) -> (i32, i32) {
    %c0_i32 = arith.constant 0 : i32
    %c0_i32_0 = arith.constant 0 : i32
    %c0_i32_1 = arith.constant 0 : i32
    return %c0_i32, %c0_i32_0 : i32, i32
  }
  func.func @transform_2(%arg0: i32) -> (i32, i32) {
    %c0_i32 = arith.constant 0 : i32
    %c0_i32_0 = arith.constant 0 : i32
    %c0_i32_1 = arith.constant 0 : i32
    return %c0_i32, %c0_i32_0 : i32, i32
  }
  func.func @transform_3(%arg0: i32) -> (i32, i32) {
    %c0_i32 = arith.constant 0 : i32
    %c0_i32_0 = arith.constant 0 : i32
    %c0_i32_1 = arith.constant 0 : i32
    return %c0_i32, %c0_i32_0 : i32, i32
  }
  func.func @transform_4(%arg0: i32) -> (i32, i32) {
    %c0_i32 = arith.constant 0 : i32
    %c0_i32_0 = arith.constant 0 : i32
    %c0_i32_1 = arith.constant 0 : i32
    return %c0_i32, %c0_i32_0 : i32, i32
  }
  func.func @transform_5(%arg0: i32) -> (i32, i32) {
    %c0_i32 = arith.constant 0 : i32
    %c0_i32_0 = arith.constant 0 : i32
    %c0_i32_1 = arith.constant 0 : i32
    return %c0_i32, %c0_i32_0 : i32, i32
  }
  func.func @transform_6(%arg0: i32) -> (i32, i32) {
    %c0_i32 = arith.constant 0 : i32
    %c0_i32_0 = arith.constant 0 : i32
    %c0_i32_1 = arith.constant 0 : i32
    return %c0_i32, %c0_i32_0 : i32, i32
  }
  func.func @transform_7(%arg0: i32) -> (i32, i32) {
    %c0_i32 = arith.constant 0 : i32
    %c0_i32_0 = arith.constant 0 : i32
    return %arg0, %c0_i32 : i32, i32
  }
}

</mosaic_0001>

<llo_original>
// kernel: densenet_actor_forward.1
$region0: #{densenet_actor_forward.1}
  #allocation0 [shape = 'u32[]', space=smem, size = 0x4, offset = 0x4, fixed_abs, tag = 'smem constant byte address 0x4 - core index']
  #allocation1 [shape = 'u32[144,128]{1,0:T(1,128)}', space=vmem, size = 0x12000, scoped, tag = 'internal scratch']
  %s0 = inlined_call_operand.vmem [shape: f32[8,12], index: 0, kind: input, shape index: {}]
  %s1 = inlined_call_operand.hbm [shape: f32[12,384], index: 1, kind: input, shape index: {}]
  %s2 = inlined_call_operand.vmem [shape: f32[1,128], index: 2, kind: input, shape index: {}]
  %s3 = inlined_call_operand.hbm [shape: f32[128,256], index: 3, kind: input, shape index: {}]
  %s4 = inlined_call_operand.vmem [shape: f32[1,128], index: 4, kind: input, shape index: {}]
  %s5 = inlined_call_operand.hbm [shape: f32[128,128], index: 5, kind: input, shape index: {}]
  %s6 = inlined_call_operand.vmem [shape: f32[1,128], index: 6, kind: input, shape index: {}]
  %s7 = inlined_call_operand.vmem [shape: f32[8,128], index: 7, kind: output, shape index: {}]
  %s8 = sld [smem:[#allocation0]]
  $region50: #{densenet_actor_forward.1} parent=0
    _
  %s10 = ssub.s32 1, %s8
  %s11 = scalar_select 0, %s10, %s8
  $region1: #{densenet_actor_forward.1} parent=0
    #allocation2 [shape = 'u8[24576]{0}', space=vmem, size = 0x6000, scoped, tag = 'input window, operand 1, single buffered']
    #allocation3 [shape = 's32[1]{0}', space=sflag, size = 0x4, scoped, tag = 'scoped memory for densenet_actor_forward.1']
    #allocation4 [shape = 'u8[131072]{0}', space=vmem, size = 0x20000, scoped, tag = 'input window, operand 3, single buffered']
    #allocation5 [shape = 's32[1]{0}', space=sflag, size = 0x4, scoped, tag = 'scoped memory for densenet_actor_forward.1']
    #allocation6 [shape = 'u8[65536]{0}', space=vmem, size = 0x10000, scoped, tag = 'input window, operand 5, single buffered']
    %12 = vsyncpa [#allocation3], 0
    %13 = vsyncpa [#allocation5], 0
    // Predicated region
    $region2: #{densenet_actor_forward.1} parent=1 // pred_check
      _
    $region3: #{densenet_actor_forward.1} parent=1 // pred_check_branch
      %15 = sbr.rel (0) target = $region5
    $region4: #{densenet_actor_forward.1} parent=1 // pred_region
      _
    $region5: #{densenet_actor_forward.1} parent=1 // pred_fallthru
      _
    // Predicated region
    $region6: #{densenet_actor_forward.1} parent=1 // pred_check
      _
    $region7: #{densenet_actor_forward.1} parent=1 // pred_check_branch
      %17 = sbr.rel (0) target = $region9
    $region8: #{densenet_actor_forward.1} parent=1 // pred_region
      %s19 = ssub.s32 768, 768
      %20 = vsyncadd [#allocation3], %s19
      %s21 = sshll.u32 [#allocation2], 4
      %s22 = int_to_ptr.vmem [resolvable:$true] %s21
      %27 = dma.hbm_to_vmem [thread:$0]  %s1, 768, %s22, [#allocation3], 384, 384, 24
    $region9: #{densenet_actor_forward.1} parent=1 // pred_fallthru
      _
    // Predicated region
    $region10: #{densenet_actor_forward.1} parent=1 // pred_check
      _
    $region11: #{densenet_actor_forward.1} parent=1 // pred_check_branch
      %29 = sbr.rel (0) target = $region13
    $region12: #{densenet_actor_forward.1} parent=1 // pred_region
      _
    $region13: #{densenet_actor_forward.1} parent=1 // pred_fallthru
      _
    // Predicated region
    $region14: #{densenet_actor_forward.1} parent=1 // pred_check
      _
    $region15: #{densenet_actor_forward.1} parent=1 // pred_check_branch
      %31 = sbr.rel (0) target = $region17
    $region16: #{densenet_actor_forward.1} parent=1 // pred_region
      %s33 = ssub.s32 4096, 4096
      %34 = vsyncadd [#allocation5], %s33
      %s35 = sshll.u32 [#allocation4], 4
      %s36 = int_to_ptr.vmem [resolvable:$true] %s35
      %41 = dma.hbm_to_vmem [thread:$0]  %s3, 4096, %s36, [#allocation5], 256, 256, 16
    $region17: #{densenet_actor_forward.1} parent=1 // pred_fallthru
      _
    // Predicated region
    $region18: #{densenet_actor_forward.1} parent=1 // pred_check
      _
    $region19: #{densenet_actor_forward.1} parent=1 // pred_check_branch
      %43 = sbr.rel (0) target = $region21
    $region20: #{densenet_actor_forward.1} parent=1 // pred_region
      _
    $region21: #{densenet_actor_forward.1} parent=1 // pred_fallthru
      _
    // Predicated region
    $region22: #{densenet_actor_forward.1} parent=1 // pred_check
      _
    $region23: #{densenet_actor_forward.1} parent=1 // pred_check_branch
      %45 = sbr.rel (0) target = $region25
    $region24: #{densenet_actor_forward.1} parent=1 // pred_region
      %s47 = ssub.s32 2048, 2048
      %48 = vsyncadd [#allocation5], %s47
      %s49 = sshll.u32 [#allocation6], 4
      %s50 = int_to_ptr.vmem [resolvable:$true] %s49
      %55 = dma.hbm_to_vmem [thread:$0]  %s5, 2048, %s50, [#allocation5], 128, 128, 8
    $region25: #{densenet_actor_forward.1} parent=1 // pred_fallthru
      _
    // Predicated region
    $region26: #{densenet_actor_forward.1} parent=1 // pred_check
      _
    $region27: #{densenet_actor_forward.1} parent=1 // pred_check_branch
      %57 = sbr.rel (0) target = $region29
    $region28: #{densenet_actor_forward.1} parent=1 // pred_region
      _
    $region29: #{densenet_actor_forward.1} parent=1 // pred_fallthru
      _
    // Predicated region
    $region30: #{densenet_actor_forward.1} parent=1 // pred_check
      _
    $region31: #{densenet_actor_forward.1} parent=1 // pred_check_branch
      %59 = sbr.rel (0) target = $region33
    $region32: #{densenet_actor_forward.1} parent=1 // pred_region
      %60 = dma.done [#allocation3], 768
    $region33: #{densenet_actor_forward.1} parent=1 // pred_fallthru
      _
    // Predicated region
    $region34: #{densenet_actor_forward.1} parent=1 // pred_check
      _
    $region35: #{densenet_actor_forward.1} parent=1 // pred_check_branch
      %62 = sbr.rel (0) target = $region37
    $region36: #{densenet_actor_forward.1} parent=1 // pred_region
      %63 = dma.done [#allocation5], 4096
    $region37: #{densenet_actor_forward.1} parent=1 // pred_fallthru
      _
    // Predicated region
    $region38: #{densenet_actor_forward.1} parent=1 // pred_check
      _
    $region39: #{densenet_actor_forward.1} parent=1 // pred_check_branch
      %65 = sbr.rel (0) target = $region41
    $region40: #{densenet_actor_forward.1} parent=1 // pred_region
      %66 = dma.done [#allocation5], 2048
    $region41: #{densenet_actor_forward.1} parent=1 // pred_fallthru
      _
    %v67 = vld [vmem:[%s0] sm:$0xff]
    %v68 = vld [vmem:[#allocation2] sm:$0xff]
    %v69 = vld [vmem:[#allocation2 + $0x8] sm:$0xff]
    %v70 = vld [vmem:[#allocation2 + $0x10] sm:$0xff]
    %v71 = vld [vmem:[#allocation2 + $0x18] sm:$0xf]
    %v72 = vld [vmem:[#allocation2 + $0x20] sm:$0xf]
    %v73 = vld [vmem:[#allocation2 + $0x28] sm:$0xf]
    %vm74 = vcmask 97280
    %v76 = vsel %vm74, %v67, 0
    %vm78 = vcmask 1043456
    %v80 = vsel %vm78, %v71, 0
    %v83 = vsel %vm78, %v72, 0
    %v86 = vsel %vm78, %v73, 0
    %88 = vmatprep.subr.mxu0 %v69
    %89 = vmatpush1.msra.mxu0 %v68
    %90 = vmatprep.subr.mxu0 %v83
    %91 = vmatpush1.msra.mxu0 %v80
    %92 = vmatprep.subr.mxu0 0.0
    %93 = vmatpush1.msra.mxu0 0.0
    %94 = vmatprep.subr.mxu0 0.0
    %95 = vmatpush1.msra.mxu0 0.0
    %96 = vmatprep.subr.mxu0 0.0
    %97 = vmatpush1.msra.mxu0 0.0
    %98 = vmatprep.subr.mxu0 0.0
    %99 = vmatpush1.msra.mxu0 0.0
    %100 = vmatprep.subr.mxu0 0.0
    %101 = vmatpush1.msra.mxu0 0.0
    %102 = vmatprep.subr.mxu0 0.0
    %103 = vmatpush1.msra.mxu0 0.0
    %104 = vmatprep.subr.mxu0 0.0
    %105 = vmatpush1.msra.mxu0 0.0
    %106 = vmatprep.subr.mxu0 0.0
    %107 = vmatpush1.msra.mxu0 0.0
    %108 = vmatprep.subr.mxu0 0.0
    %109 = vmatpush1.msra.mxu0 0.0
    %110 = vmatprep.subr.mxu0 0.0
    %111 = vmatpush1.msra.mxu0 0.0
    %112 = vmatprep.subr.mxu0 0.0
    %113 = vmatpush1.msra.mxu0 0.0
    %114 = vmatprep.subr.mxu0 0.0
    %115 = vmatpush1.msra.mxu0 0.0
    %116 = vmatprep.subr.mxu0 0.0
    %117 = vmatpush1.msra.mxu0 0.0
    %118 = vmatprep.subr.mxu0 0.0
    %119 = vmatpush1.msra.mxu0 0.0
    %120 = vmatprep.subr.mxu0 0.0
    %121 = vmatpush1.msra.mxu0 0.0
    %122 = vmatprep.subr.mxu0 0.0
    %123 = vmatpush1.msra.mxu0 0.0
    %124 = vmatprep.subr.mxu0 0.0
    %125 = vmatpush1.msra.mxu0 0.0
    %126 = vmatprep.subr.mxu0 0.0
    %127 = vmatpush1.msra.mxu0 0.0
    %128 = vmatprep.subr.mxu0 0.0
    %129 = vmatpush1.msra.mxu0 0.0
    %130 = vmatprep.subr.mxu0 0.0
    %131 = vmatpush1.msra.mxu0 0.0
    %132 = vmatprep.subr.mxu0 0.0
    %133 = vmatpush1.msra.mxu0 0.0
    %134 = vmatprep.subr.mxu0 0.0
    %135 = vmatpush1.msra.mxu0 0.0
    %136 = vmatprep.subr.mxu0 0.0
    %137 = vmatpush1.msra.mxu0 0.0
    %138 = vmatprep.subr.mxu0 0.0
    %139 = vmatpush1.msra.mxu0 0.0
    %140 = vmatprep.subr.mxu0 0.0
    %141 = vmatpush1.msra.mxu0 0.0
    %142 = vmatprep.subr.mxu0 0.0
    %143 = vmatpush1.msra.mxu0 0.0
    %144 = vmatprep.subr.mxu0 0.0
    %145 = vmatpush1.msra.mxu0 0.0
    %146 = vmatprep.subr.mxu0 0.0
    %147 = vmatpush1.msra.mxu0 0.0
    %148 = vmatprep.subr.mxu0 0.0
    %149 = vmatpush1.msra.mxu0 0.0
    %150 = vmatprep.subr.mxu0 0.0
    %151 = vmatpush1.msra.mxu0 0.0
    %152 = vmatprep.mubr.f32.mxu0 0.0
    %153 = vmatmul.mubr.f32.gmra.mrb[0].mxu0 %v76
    %v154 = vpop.f32.mrb[0].mxu0
    %v155 = vadd.f32 0.0, %v154
    %v156 = vpop.f32.mrb[0].mxu0
    %v157 = vadd.f32 0.0, %v156
    %158 = vdwg.mxu0
    %159 = vmatprep.subr.mxu0 0.0
    %160 = vmatpush1.msra.mxu0 %v70
    %161 = vmatprep.subr.mxu0 0.0
    %162 = vmatpush1.msra.mxu0 %v86
    %163 = vmatprep.subr.mxu0 0.0
    %164 = vmatpush1.msra.mxu0 0.0
    %165 = vmatprep.subr.mxu0 0.0
    %166 = vmatpush1.msra.mxu0 0.0
    %167 = vmatprep.subr.mxu0 0.0
    %168 = vmatpush1.msra.mxu0 0.0
    %169 = vmatprep.subr.mxu0 0.0
    %170 = vmatpush1.msra.mxu0 0.0
    %171 = vmatprep.subr.mxu0 0.0
    %172 = vmatpush1.msra.mxu0 0.0
    %173 = vmatprep.subr.mxu0 0.0
    %174 = vmatpush1.msra.mxu0 0.0
    %175 = vmatprep.subr.mxu0 0.0
    %176 = vmatpush1.msra.mxu0 0.0
    %177 = vmatprep.subr.mxu0 0.0
    %178 = vmatpush1.msra.mxu0 0.0
    %179 = vmatprep.subr.mxu0 0.0
    %180 = vmatpush1.msra.mxu0 0.0
    %181 = vmatprep.subr.mxu0 0.0
    %182 = vmatpush1.msra.mxu0 0.0
    %183 = vmatprep.subr.mxu0 0.0
    %184 = vmatpush1.msra.mxu0 0.0
    %185 = vmatprep.subr.mxu0 0.0
    %186 = vmatpush1.msra.mxu0 0.0
    %187 = vmatprep.subr.mxu0 0.0
    %188 = vmatpush1.msra.mxu0 0.0
    %189 = vmatprep.subr.mxu0 0.0
    %190 = vmatpush1.msra.mxu0 0.0
    %191 = vmatprep.subr.mxu0 0.0
    %192 = vmatpush1.msra.mxu0 0.0
    %193 = vmatprep.subr.mxu0 0.0
    %194 = vmatpush1.msra.mxu0 0.0
    %195 = vmatprep.subr.mxu0 0.0
    %196 = vmatpush1.msra.mxu0 0.0
    %197 = vmatprep.subr.mxu0 0.0
    %198 = vmatpush1.msra.mxu0 0.0
    %199 = vmatprep.subr.mxu0 0.0
    %200 = vmatpush1.msra.mxu0 0.0
    %201 = vmatprep.subr.mxu0 0.0
    %202 = vmatpush1.msra.mxu0 0.0
    %203 = vmatprep.subr.mxu0 0.0
    %204 = vmatpush1.msra.mxu0 0.0
    %205 = vmatprep.subr.mxu0 0.0
    %206 = vmatpush1.msra.mxu0 0.0
    %207 = vmatprep.subr.mxu0 0.0
    %208 = vmatpush1.msra.mxu0 0.0
    %209 = vmatprep.subr.mxu0 0.0
    %210 = vmatpush1.msra.mxu0 0.0
    %211 = vmatprep.subr.mxu0 0.0
    %212 = vmatpush1.msra.mxu0 0.0
    %213 = vmatprep.subr.mxu0 0.0
    %214 = vmatpush1.msra.mxu0 0.0
    %215 = vmatprep.subr.mxu0 0.0
    %216 = vmatpush1.msra.mxu0 0.0
    %217 = vmatprep.subr.mxu0 0.0
    %218 = vmatpush1.msra.mxu0 0.0
    %219 = vmatprep.subr.mxu0 0.0
    %220 = vmatpush1.msra.mxu0 0.0
    %221 = vmatprep.subr.mxu0 0.0
    %222 = vmatpush1.msra.mxu0 0.0
    %223 = vmatprep.mubr.f32.mxu0 0.0
    %224 = vmatmul.mubr.f32.gmra.mrb[0].mxu0 %v76
    %v225 = vpop.f32.mrb[0].mxu0
    %v226 = vadd.f32 0.0, %v225
    %v227 = vpop.f32.mrb[0].mxu0
    %228 = vdwg.mxu0
    %v229 = vld [vmem:[%s2] sm:$0x1]
    %v231 = vlaneseq
    %v232 = vshrl.u32 %v231, 7
    %v233 = vsub.s32 0, %v232
    %v234 = vrot.slane %v229, %v233
    %v236 = vadd.f32 %v155, %v234
    %v237 = vxor.u32 %v236, 2147483648
    %v238 = vmul.f32 %v237, 1.442695
    %v239 = vpow.pop %v238
    %v240 = vadd.f32 %v239, 1.0
    %v241 = vrcp.pop %v240
    %v242 = vmul.f32 1.0, %v241
    %v243 = vmul.f32 %v236, %v242
    %v244 = vld [vmem:[#allocation4] sm:$0xff]
    %v245 = vld [vmem:[#allocation4 + $0x8] sm:$0xff]
    %v246 = vld [vmem:[#allocation4 + $0x10] sm:$0xff]
    %v247 = vld [vmem:[#allocation4 + $0x18] sm:$0xff]
    %v248 = vld [vmem:[#allocation4 + $0x20] sm:$0xff]
    %v249 = vld [vmem:[#allocation4 + $0x28] sm:$0xff]
    %v250 = vld [vmem:[#allocation4 + $0x30] sm:$0xff]
    %v251 = vld [vmem:[#allocation4 + $0x38] sm:$0xff]
    %v252 = vld [vmem:[#allocation4 + $0x40] sm:$0xff]
    %v253 = vld [vmem:[#allocation4 + $0x48] sm:$0xff]
    %v254 = vld [vmem:[#allocation4 + $0x50] sm:$0xff]
    %v255 = vld [vmem:[#allocation4 + $0x58] sm:$0xff]
    %v256 = vld [vmem:[#allocation4 + $0x60] sm:$0xff]
    %v257 = vld [vmem:[#allocation4 + $0x68] sm:$0xff]
    %v258 = vld [vmem:[#allocation4 + $0x70] sm:$0xff]
    %v259 = vld [vmem:[#allocation4 + $0x78] sm:$0xff]
    %v260 = vld [vmem:[#allocation4 + $0x80] sm:$0xff]
    %v261 = vld [vmem:[#allocation4 + $0x88] sm:$0xff]
    %v262 = vld [vmem:[#allocation4 + $0x90] sm:$0xff]
    %v263 = vld [vmem:[#allocation4 + $0x98] sm:$0xff]
    %v264 = vld [vmem:[#allocation4 + $0xa0] sm:$0xff]
    %v265 = vld [vmem:[#allocation4 + $0xa8] sm:$0xff]
    %v266 = vld [vmem:[#allocation4 + $0xb0] sm:$0xff]
    %v267 = vld [vmem:[#allocation4 + $0xb8] sm:$0xff]
    %v268 = vld [vmem:[#allocation4 + $0xc0] sm:$0xff]
    %v269 = vld [vmem:[#allocation4 + $0xc8] sm:$0xff]
    %v270 = vld [vmem:[#allocation4 + $0xd0] sm:$0xff]
    %v271 = vld [vmem:[#allocation4 + $0xd8] sm:$0xff]
    %v272 = vld [vmem:[#allocation4 + $0xe0] sm:$0xff]
    %v273 = vld [vmem:[#allocation4 + $0xe8] sm:$0xff]
    %v274 = vld [vmem:[#allocation4 + $0xf0] sm:$0xff]
    %v275 = vld [vmem:[#allocation4 + $0xf8] sm:$0xff]
    %276 = vmatprep.subr.mxu0 %v245
    %277 = vmatpush1.msra.mxu0 %v244
    %278 = vmatprep.subr.mxu0 %v247
    %279 = vmatpush1.msra.mxu0 %v246
    %280 = vmatprep.subr.mxu0 %v249
    %281 = vmatpush1.msra.mxu0 %v248
    %282 = vmatprep.subr.mxu0 %v251
    %283 = vmatpush1.msra.mxu0 %v250
    %284 = vmatprep.subr.mxu0 %v253
    %285 = vmatpush1.msra.mxu0 %v252
    %286 = vmatprep.subr.mxu0 %v255
    %287 = vmatpush1.msra.mxu0 %v254
    %288 = vmatprep.subr.mxu0 %v257
    %289 = vmatpush1.msra.mxu0 %v256
    %290 = vmatprep.subr.mxu0 %v259
    %291 = vmatpush1.msra.mxu0 %v258
    %292 = vmatprep.subr.mxu0 %v261
    %293 = vmatpush1.msra.mxu0 %v260
    %294 = vmatprep.subr.mxu0 %v263
    %295 = vmatpush1.msra.mxu0 %v262
    %296 = vmatprep.subr.mxu0 %v265
    %297 = vmatpush1.msra.mxu0 %v264
    %298 = vmatprep.subr.mxu0 %v267
    %299 = vmatpush1.msra.mxu0 %v266
    %300 = vmatprep.subr.mxu0 %v269
    %301 = vmatpush1.msra.mxu0 %v268
    %302 = vmatprep.subr.mxu0 %v271
    %303 = vmatpush1.msra.mxu0 %v270
    %304 = vmatprep.subr.mxu0 %v273
    %305 = vmatpush1.msra.mxu0 %v272
    %306 = vmatprep.subr.mxu0 %v275
    %307 = vmatpush1.msra.mxu0 %v274
    %308 = vmatprep.subr.mxu0 0.0
    %309 = vmatpush1.msra.mxu0 0.0
    %310 = vmatprep.subr.mxu0 0.0
    %311 = vmatpush1.msra.mxu0 0.0
    %312 = vmatprep.subr.mxu0 0.0
    %313 = vmatpush1.msra.mxu0 0.0
    %314 = vmatprep.subr.mxu0 0.0
    %315 = vmatpush1.msra.mxu0 0.0
    %316 = vmatprep.subr.mxu0 0.0
    %317 = vmatpush1.msra.mxu0 0.0
    %318 = vmatprep.subr.mxu0 0.0
    %319 = vmatpush1.msra.mxu0 0.0
    %320 = vmatprep.subr.mxu0 0.0
    %321 = vmatpush1.msra.mxu0 0.0
    %322 = vmatprep.subr.mxu0 0.0
    %323 = vmatpush1.msra.mxu0 0.0
    %324 = vmatprep.subr.mxu0 0.0
    %325 = vmatpush1.msra.mxu0 0.0
    %326 = vmatprep.subr.mxu0 0.0
    %327 = vmatpush1.msra.mxu0 0.0
    %328 = vmatprep.subr.mxu0 0.0
    %329 = vmatpush1.msra.mxu0 0.0
    %330 = vmatprep.subr.mxu0 0.0
    %331 = vmatpush1.msra.mxu0 0.0
    %332 = vmatprep.subr.mxu0 0.0
    %333 = vmatpush1.msra.mxu0 0.0
    %334 = vmatprep.subr.mxu0 0.0
    %335 = vmatpush1.msra.mxu0 0.0
    %336 = vmatprep.subr.mxu0 0.0
    %337 = vmatpush1.msra.mxu0 0.0
    %338 = vmatprep.subr.mxu0 0.0
    %339 = vmatpush1.msra.mxu0 0.0
    %340 = vmatprep.mubr.f32.mxu0 0.0
    %341 = vmatmul.mubr.f32.gmra.mrb[0].mxu0 %v243
    %v342 = vpop.f32.mrb[0].mxu0
    %v343 = vadd.f32 0.0, %v342
    %v344 = vpop.f32.mrb[0].mxu0
    %v345 = vadd.f32 0.0, %v344
    %346 = vdwg.mxu0
    %v347 = vadd.f32 %v157, %v343
    %v348 = vld [vmem:[%s4] sm:$0x1]
    %v350 = vlaneseq
    %v351 = vshrl.u32 %v350, 7
    %v352 = vsub.s32 0, %v351
    %v353 = vrot.slane %v348, %v352
    %v355 = vadd.f32 %v347, %v353
    %v356 = vxor.u32 %v355, 2147483648
    %v357 = vmul.f32 %v356, 1.442695
    %v358 = vpow.pop %v357
    %v359 = vadd.f32 %v358, 1.0
    %v360 = vrcp.pop %v359
    %v361 = vmul.f32 1.0, %v360
    %v362 = vmul.f32 %v355, %v361
    %v363 = vadd.f32 %v226, %v345
    %v364 = vld [vmem:[#allocation6] sm:$0xff]
    %v365 = vld [vmem:[#allocation6 + $0x8] sm:$0xff]
    %v366 = vld [vmem:[#allocation6 + $0x10] sm:$0xff]
    %v367 = vld [vmem:[#allocation6 + $0x18] sm:$0xff]
    %v368 = vld [vmem:[#allocation6 + $0x20] sm:$0xff]
    %v369 = vld [vmem:[#allocation6 + $0x28] sm:$0xff]
    %v370 = vld [vmem:[#allocation6 + $0x30] sm:$0xff]
    %v371 = vld [vmem:[#allocation6 + $0x38] sm:$0xff]
    %v372 = vld [vmem:[#allocation6 + $0x40] sm:$0xff]
    %v373 = vld [vmem:[#allocation6 + $0x48] sm:$0xff]
    %v374 = vld [vmem:[#allocation6 + $0x50] sm:$0xff]
    %v375 = vld [vmem:[#allocation6 + $0x58] sm:$0xff]
    %v376 = vld [vmem:[#allocation6 + $0x60] sm:$0xff]
    %v377 = vld [vmem:[#allocation6 + $0x68] sm:$0xff]
    %v378 = vld [vmem:[#allocation6 + $0x70] sm:$0xff]
    %v379 = vld [vmem:[#allocation6 + $0x78] sm:$0xff]
    %380 = vmatprep.subr.mxu0 0.0
    %381 = vmatpush1.msra.mxu0 %v364
    %382 = vmatprep.subr.mxu0 0.0
    %383 = vmatpush1.msra.mxu0 %v365
    %384 = vmatprep.subr.mxu0 0.0
    %385 = vmatpush1.msra.mxu0 %v366
    %386 = vmatprep.subr.mxu0 0.0
    %387 = vmatpush1.msra.mxu0 %v367
    %388 = vmatprep.subr.mxu0 0.0
    %389 = vmatpush1.msra.mxu0 %v368
    %390 = vmatprep.subr.mxu0 0.0
    %391 = vmatpush1.msra.mxu0 %v369
    %392 = vmatprep.subr.mxu0 0.0
    %393 = vmatpush1.msra.mxu0 %v370
    %394 = vmatprep.subr.mxu0 0.0
    %395 = vmatpush1.msra.mxu0 %v371
    %396 = vmatprep.subr.mxu0 0.0
    %397 = vmatpush1.msra.mxu0 %v372
    %398 = vmatprep.subr.mxu0 0.0
    %399 = vmatpush1.msra.mxu0 %v373
    %400 = vmatprep.subr.mxu0 0.0
    %401 = vmatpush1.msra.mxu0 %v374
    %402 = vmatprep.subr.mxu0 0.0
    %403 = vmatpush1.msra.mxu0 %v375
    %404 = vmatprep.subr.mxu0 0.0
    %405 = vmatpush1.msra.mxu0 %v376
    %406 = vmatprep.subr.mxu0 0.0
    %407 = vmatpush1.msra.mxu0 %v377
    %408 = vmatprep.subr.mxu0 0.0
    %409 = vmatpush1.msra.mxu0 %v378
    %410 = vmatprep.subr.mxu0 0.0
    %411 = vmatpush1.msra.mxu0 %v379
    %412 = vmatprep.subr.mxu0 0.0
    %413 = vmatpush1.msra.mxu0 0.0
    %414 = vmatprep.subr.mxu0 0.0
    %415 = vmatpush1.msra.mxu0 0.0
    %416 = vmatprep.subr.mxu0 0.0
    %417 = vmatpush1.msra.mxu0 0.0
    %418 = vmatprep.subr.mxu0 0.0
    %419 = vmatpush1.msra.mxu0 0.0
    %420 = vmatprep.subr.mxu0 0.0
    %421 = vmatpush1.msra.mxu0 0.0
    %422 = vmatprep.subr.mxu0 0.0
    %423 = vmatpush1.msra.mxu0 0.0
    %424 = vmatprep.subr.mxu0 0.0
    %425 = vmatpush1.msra.mxu0 0.0
    %426 = vmatprep.subr.mxu0 0.0
    %427 = vmatpush1.msra.mxu0 0.0
    %428 = vmatprep.subr.mxu0 0.0
    %429 = vmatpush1.msra.mxu0 0.0
    %430 = vmatprep.subr.mxu0 0.0
    %431 = vmatpush1.msra.mxu0 0.0
    %432 = vmatprep.subr.mxu0 0.0
    %433 = vmatpush1.msra.mxu0 0.0
    %434 = vmatprep.subr.mxu0 0.0
    %435 = vmatpush1.msra.mxu0 0.0
    %436 = vmatprep.subr.mxu0 0.0
    %437 = vmatpush1.msra.mxu0 0.0
    %438 = vmatprep.subr.mxu0 0.0
    %439 = vmatpush1.msra.mxu0 0.0
    %440 = vmatprep.subr.mxu0 0.0
    %441 = vmatpush1.msra.mxu0 0.0
    %442 = vmatprep.subr.mxu0 0.0
    %443 = vmatpush1.msra.mxu0 0.0
    %444 = vmatprep.mubr.f32.mxu0 0.0
    %445 = vmatmul.mubr.f32.gmra.mrb[0].mxu0 %v362
    %v446 = vpop.f32.mrb[0].mxu0
    %v447 = vadd.f32 0.0, %v446
    %v448 = vpop.f32.mrb[0].mxu0
    %449 = vdwg.mxu0
    %v450 = vadd.f32 %v363, %v447
    %v451 = vld [vmem:[%s6] sm:$0x1]
    %v453 = vlaneseq
    %v454 = vshrl.u32 %v453, 7
    %v455 = vsub.s32 0, %v454
    %v456 = vrot.slane %v451, %v455
    %v458 = vadd.f32 %v450, %v456
    %v459 = vlaneseq
    %v460 = vand.u32 %v459, 127
    %vm461 = vcmp.lt.s32.totalorder %v460, 6
    %v462 = vsel %vm461, -9.0, -5.0
    %v463 = vsel %vm461, 9.0, 2.0
    %v464 = vmax.f32 %v462, %v458
    %v465 = vmin.f32 %v463, %v464
    %v466 = vmul.f32 %v465, 1.442695
    %v467 = vpow.pop %v466
    %v468 = vsel %vm461, %v465, %v467
    %469 = vst [vmem:[%s7] sm:$0xff] %v468
    // Predicated region
    $region42: #{densenet_actor_forward.1} parent=1 // pred_check
      _
    $region43: #{densenet_actor_forward.1} parent=1 // pred_check_branch
      %471 = sbr.rel (0) target = $region45
    $region44: #{densenet_actor_forward.1} parent=1 // pred_region
      _
    $region45: #{densenet_actor_forward.1} parent=1 // pred_fallthru
      _
    // Predicated region
    $region46: #{densenet_actor_forward.1} parent=1 // pred_check
      _
    $region47: #{densenet_actor_forward.1} parent=1 // pred_check_branch
      %473 = sbr.rel (0) target = $region49
    $region48: #{densenet_actor_forward.1} parent=1 // pred_region
      _
    $region49: #{densenet_actor_forward.1} parent=1 // pred_fallthru
      _
    %474 = vsyncpa [#allocation3], 1
    %475 = vsyncpa [#allocation5], 1

</llo_original>
